<compile_context>
chip_gen: v7x
topology: tpu7x:2x2x1
jax: 0.10.0
libtpu: 0.0.40
codegen_flags: <defaults>
</compile_context>

<pallas_src>
import jax
import jax.numpy as jnp
from jax.experimental import pallas as pl
from jax.experimental.pallas import tpu as pltpu


def _cross_attn_kernel(x_ref, a_ref, mv_ref, b_ref, o_ref):
    # Token-in-lane layout (columns = tokens):
    #   x_ref : (C, TN)  tile of tokens (channels on sublanes, tokens on lanes)
    #   a_ref : (S, C)   A  = scale * K @ Wq   (precomputed in wrapper)
    #   mv_ref: (C, S)   Mv = Wp @ V^T         (precomputed in wrapper)
    #   b_ref : (C, 1)   proj bias as a column
    #   o_ref : (C, TN)  x + proj(attn @ V)
    x = x_ref[...]

    logits = jnp.dot(a_ref[...], x, preferred_element_type=jnp.float32)   # (S, TN)

    # Exact softmax over the S conditioning tokens (axis 0).
    m = jnp.max(logits, axis=0, keepdims=True)                            # (1, TN)
    p = jnp.exp(logits - m)                                               # (S, TN)
    attn = p / jnp.sum(p, axis=0, keepdims=True)                          # (S, TN)

    y = jnp.dot(mv_ref[...], attn, preferred_element_type=jnp.float32)    # (C, TN)
    y = y + b_ref[...]

    # Residual in f32, single cast to the output dtype.
    o_ref[...] = (x.astype(jnp.float32) + y).astype(o_ref.dtype)


def cross_attention_block(x, cond, wq, wk, wv, wp, bp, *, tile_n=256):
    """x: (B, C, H, W, T), cond: (B, S, cond_dim). Returns x + cross_attn(x, cond)."""
    B, C, H, W, T = x.shape
    # TODO(synk): the PyTorch forward's matmul broadcasting only type-checks for B == 1.
    assert B == 1, "CrossAttentionBlock.forward only works for B == 1"
    S, cond_dim = cond.shape[1], cond.shape[2]
    scale = float(C) ** -0.5

    N = H * W * T
    tile_n = min(tile_n, N)
    assert N % tile_n == 0 and (tile_n == N or tile_n % 128 == 0), (
        "tile_n must divide N and be lane-aligned (multiple of 128) or cover all tokens")

    # (1, C, H, W, T) -> (C, N): a pure reshape of the NCHWT layout, no HBM transpose.
    # Column order (h, w, t) differs from PyTorch's (t, h, w) flatten, but attention is
    # strictly per-token, so positions round-trip identically on the reshape back.
    x_cm = x.reshape(C, N)
    cond2d = cond.reshape(S, cond_dim)

    # Hoist + fuse all conditioning-side projections (tiny one-off matmuls), done in
    # HIGHEST precision so no error leaks into the kernel inputs:
    #   k_s = Wk c_s ;  v_s = Wv c_s
    #   logits[s, n] = scale * k_s . (Wq x_n)            = ((scale*K) @ Wq) @ x = A @ x
    #   out_n        = Wp (sum_s attn[s,n] v_s) + bias   = (Wp @ V^T) @ attn_n + bias
    hp = jax.lax.Precision.HIGHEST
    k_sc = jnp.matmul(cond2d, wk.T, precision=hp)            # (S, C)  rows = k_s
    v_cs = jnp.matmul(wv, cond2d.T, precision=hp)            # (C, S)  cols = v_s
    a_sc = jnp.matmul(k_sc * scale, wq, precision=hp)        # (S, C)  A  = scale*K @ Wq
    mv_cs = jnp.matmul(wp, v_cs, precision=hp)               # (C, S)  Mv = Wp @ V^T
    bp_col = bp.reshape(C, 1).astype(jnp.float32)

    grid = (N // tile_n,)
    out_cm = pl.pallas_call(
        _cross_attn_kernel,
        out_shape=jax.ShapeDtypeStruct((C, N), x.dtype),
        grid=grid,
        in_specs=[
            pl.BlockSpec((C, tile_n), lambda i: (0, i)),   # x tokens (lane-tiled)
            pl.BlockSpec((S, C), lambda i: (0, 0)),        # A  = scale * K @ Wq
            pl.BlockSpec((C, S), lambda i: (0, 0)),        # Mv = Wp @ V^T
            pl.BlockSpec((C, 1), lambda i: (0, 0)),        # proj bias (column)
        ],
        out_specs=pl.BlockSpec((C, tile_n), lambda i: (0, i)),
        compiler_params=pltpu.CompilerParams(
            dimension_semantics=("parallel",)),
    )(x_cm, a_sc, mv_cs, bp_col)

    return out_cm.reshape(B, C, H, W, T)   # free reshape back to (B, C, H, W, T)


def _reference(x, cond, wq, wk, wv, wp, bp):
    """Pure-JAX mirror of the PyTorch forward (B == 1), full-precision matmuls."""
    B, C, H, W, T = x.shape
    scale = float(C) ** -0.5
    hp = jax.lax.Precision.HIGHEST
    xt = jnp.transpose(x, (0, 4, 2, 3, 1)).reshape(B * T * H * W, C)
    q = jnp.matmul(xt, wq.T, precision=hp)
    k = jnp.matmul(cond[0], wk.T, precision=hp)
    v = jnp.matmul(cond[0], wv.T, precision=hp)
    attn = jax.nn.softmax(jnp.matmul(q * scale, k.T, precision=hp), axis=-1)
    out = jnp.matmul(attn, v, precision=hp)
    out = jnp.matmul(out, wp.T, precision=hp) + bp
    out = jnp.transpose(out.reshape(B, T, H, W, C), (0, 4, 2, 3, 1))
    return x + out


if __name__ == "__main__":
    B, C, H, W, T = 1, 32, 8, 8, 8      # dim = C = 32, N = 512 tokens
    cond_dim, S = 16, 4

    key = jax.random.PRNGKey(0)
    ks = jax.random.split(key, 7)
    x = jax.random.normal(ks[0], (B, C, H, W, T), jnp.float32)
    cond = jax.random.normal(ks[1], (B, S, cond_dim), jnp.float32)

    def lin_init(k, shape, fan_in):     # deterministic, torch-Linear-like scale
        bound = 1.0 / (fan_in ** 0.5)
        return jax.random.uniform(k, shape, jnp.float32, -bound, bound)

    wq = lin_init(ks[2], (C, C), C)            # nn.Linear(dim, dim, bias=False)
    wk = lin_init(ks[3], (C, cond_dim), cond_dim)
    wv = lin_init(ks[4], (C, cond_dim), cond_dim)
    wp = lin_init(ks[5], (C, C), C)            # nn.Linear(dim, dim) weight
    bp = lin_init(ks[6], (C,), C)              # nn.Linear(dim, dim) bias

    out = jax.block_until_ready(cross_attention_block(x, cond, wq, wk, wv, wp, bp))
    ref = _reference(x, cond, wq, wk, wv, wp, bp)

    assert out.shape == x.shape
    assert jnp.allclose(out, ref, atol=2e-3, rtol=2e-3), "mismatch vs reference"
    print("KERNEL_OK")
</pallas_src>

<mosaic_0001>
module attributes {stable_mosaic.version = 11 : i64} {
  func.func @_cross_attn_kernel(%arg0: i32, %arg1: memref<32x256xf32, #tpu.memory_space<vmem>>, %arg2: memref<4x32xf32, #tpu.memory_space<vmem>>, %arg3: memref<32x4xf32, #tpu.memory_space<vmem>>, %arg4: memref<32x1xf32, #tpu.memory_space<vmem>>, %arg5: memref<32x256xf32, #tpu.memory_space<vmem>>) attributes {dimension_semantics = [#tpu.dimension_semantics<parallel>], iteration_bounds = array<i64: 2>, scalar_prefetch = 0 : i64, scratch_operands = 0 : i64, tpu.core_type = #tpu.core_type<tc>, window_params = [{transform_indices = @transform_0, window_bounds = array<i64: 32, 256>}, {pipeline_mode = #tpu.pipeline_mode<synchronous>, transform_indices = @transform_1, window_bounds = array<i64: 4, 32>}, {pipeline_mode = #tpu.pipeline_mode<synchronous>, transform_indices = @transform_2, window_bounds = array<i64: 32, 4>}, {pipeline_mode = #tpu.pipeline_mode<synchronous>, transform_indices = @transform_3, window_bounds = array<i64: 32, 1>}, {transform_indices = @transform_4, window_bounds = array<i64: 32, 256>}]} {
    %c0 = arith.constant 0 : index
    %c0_0 = arith.constant 0 : index
    %0 = vector.load %arg1[%c0, %c0_0] : memref<32x256xf32, #tpu.memory_space<vmem>>, vector<32x256xf32>
    %c0_1 = arith.constant 0 : index
    %c0_2 = arith.constant 0 : index
    %1 = vector.load %arg2[%c0_1, %c0_2] : memref<4x32xf32, #tpu.memory_space<vmem>>, vector<4x32xf32>
    %cst = arith.constant dense<0.000000e+00> : vector<4x256xf32>
    %2 = tpu.matmul %1, %0, %cst {dimension_numbers = #tpu.dot_dimension_numbers<[1], [0], [0], [1], [0, 0, 1, 1], [], []>} : vector<4x32xf32>, vector<32x256xf32>, vector<4x256xf32> -> vector<4x256xf32>
    %cst_3 = arith.constant dense<0xFF800000> : vector<256xf32>
    %3 = vector.multi_reduction <maximumf>, %2, %cst_3 [0] : vector<4x256xf32> to vector<256xf32>
    %4 = vector.shape_cast %3 : vector<256xf32> to vector<1x256xf32>
    %5 = vector.broadcast %4 : vector<1x256xf32> to vector<4x256xf32>
    %6 = arith.subf %2, %5 : vector<4x256xf32>
    %7 = math.exp %6 : vector<4x256xf32>
    %cst_4 = arith.constant dense<0.000000e+00> : vector<256xf32>
    %8 = vector.multi_reduction <add>, %7, %cst_4 [0] : vector<4x256xf32> to vector<256xf32>
    %9 = vector.shape_cast %8 : vector<256xf32> to vector<1x256xf32>
    %10 = vector.broadcast %9 : vector<1x256xf32> to vector<4x256xf32>
    %11 = arith.divf %7, %10 : vector<4x256xf32>
    %c0_5 = arith.constant 0 : index
    %c0_6 = arith.constant 0 : index
    %12 = vector.load %arg3[%c0_5, %c0_6] : memref<32x4xf32, #tpu.memory_space<vmem>>, vector<32x4xf32>
    %cst_7 = arith.constant dense<0.000000e+00> : vector<32x256xf32>
    %13 = tpu.matmul %12, %11, %cst_7 {dimension_numbers = #tpu.dot_dimension_numbers<[1], [0], [0], [1], [0, 0, 1, 1], [], []>} : vector<32x4xf32>, vector<4x256xf32>, vector<32x256xf32> -> vector<32x256xf32>
    %c0_8 = arith.constant 0 : index
    %c0_9 = arith.constant 0 : index
    %14 = vector.load %arg4[%c0_8, %c0_9] : memref<32x1xf32, #tpu.memory_space<vmem>>, vector<32x1xf32>
    %15 = vector.broadcast %14 : vector<32x1xf32> to vector<32x256xf32>
    %16 = arith.addf %13, %15 : vector<32x256xf32>
    %17 = arith.addf %0, %16 : vector<32x256xf32>
    %c0_10 = arith.constant 0 : index
    %c0_11 = arith.constant 0 : index
    %18 = vector.load %arg5[%c0_10, %c0_11] : memref<32x256xf32, #tpu.memory_space<vmem>>, vector<32x256xf32>
    tpu.vector_store %arg5[%c0_10, %c0_11], %17 {strides = array<i32>} : memref<32x256xf32, #tpu.memory_space<vmem>>, vector<32x256xf32>,
    return
  }
  func.func @transform_0(%arg0: i32) -> (i32, i32) {
    %c0_i32 = arith.constant 0 : i32
    %c0_i32_0 = arith.constant 0 : i32
    return %c0_i32, %arg0 : i32, i32
  }
  func.func @transform_1(%arg0: i32) -> (i32, i32) {
    %c0_i32 = arith.constant 0 : i32
    %c0_i32_0 = arith.constant 0 : i32
    %c0_i32_1 = arith.constant 0 : i32
    return %c0_i32, %c0_i32_0 : i32, i32
  }
  func.func @transform_2(%arg0: i32) -> (i32, i32) {
    %c0_i32 = arith.constant 0 : i32
    %c0_i32_0 = arith.constant 0 : i32
    %c0_i32_1 = arith.constant 0 : i32
    return %c0_i32, %c0_i32_0 : i32, i32
  }
  func.func @transform_3(%arg0: i32) -> (i32, i32) {
    %c0_i32 = arith.constant 0 : i32
    %c0_i32_0 = arith.constant 0 : i32
    %c0_i32_1 = arith.constant 0 : i32
    return %c0_i32, %c0_i32_0 : i32, i32
  }
  func.func @transform_4(%arg0: i32) -> (i32, i32) {
    %c0_i32 = arith.constant 0 : i32
    %c0_i32_0 = arith.constant 0 : i32
    return %c0_i32, %arg0 : i32, i32
  }
}

</mosaic_0001>

<llo_original>
// kernel: tpu_custom_call.1
$region0: #{tpu_custom_call.1}
  #allocation0 [shape = 'u32[]', space=smem, size = 0x4, offset = 0x4, fixed_abs, tag = 'smem constant byte address 0x4 - core index']
  #allocation1 [shape = 'u32[144,128]{1,0:T(1,128)}', space=vmem, size = 0x12000, scoped, tag = 'internal scratch']
  %s0 = inlined_call_operand.hbm [shape: f32[32,512], index: 0, kind: input, shape index: {}]
  %s1 = inlined_call_operand.vmem [shape: f32[4,32], index: 1, kind: input, shape index: {}]
  %s2 = inlined_call_operand.vmem [shape: f32[32,4], index: 2, kind: input, shape index: {}]
  %s3 = inlined_call_operand.vmem [shape: f32[32,1], index: 3, kind: input, shape index: {}]
  %s4 = inlined_call_operand.hbm [shape: f32[32,512], index: 4, kind: output, shape index: {}]
  %s5 = sld [smem:[#allocation0]]
  $region53: #{tpu_custom_call.1} parent=0
    _
  %s7 = ssub.s32 1, %s5
  %s8 = scalar_select 0, %s7, %s5
  $region1: #{tpu_custom_call.1} parent=0
    #allocation2 [shape = 'u8[65536]{0}', space=vmem, size = 0x10000, scoped, tag = 'input window, operand 0']
    #allocation3 [shape = 's32[2]{0}', space=sflag, size = 0x8, scoped, tag = 'scoped memory for tpu_custom_call.1']
    #allocation4 [shape = 's32[2]{0}', space=sflag, size = 0x8, scoped, tag = 'scoped memory for tpu_custom_call.1']
    #allocation5 [shape = 'u8[65536]{0}', space=vmem, size = 0x10000, scoped, tag = 'output window, operand 0']
    %9 = vsyncpa [#allocation3], 0
    %s10 = scalar_lea.sflag [#allocation3], 1
    %11 = vsyncpa %s10, 0
    %12 = vsyncpa [#allocation4], 0
    %s13 = scalar_lea.sflag [#allocation4], 1
    %14 = vsyncpa %s13, 0
    loop: start=0, step=1, limit=4
    $region2: #{tpu_custom_call.1} parent=1 // loop_pre_header
      _
    $region3: #{tpu_custom_call.1} parent=1 // loop_header
      %s16 = sphi 0, %s20
      %p17 = scmp.ge.s32.totalorder %s16, 4
      %s26 = sphi 0, %s28
      %s29 = sphi 0, %s26
      %s30 = sphi 0, %s29
      %s46 = sphi 0, %s30
      %s50 = sphi 0, %s50
      %s52 = sphi 0, %s50
      %s53 = sphi 0, %s52
      %s67 = sphi 0, %s53
      %s71 = sphi 0, %s71
      %s73 = sphi 0, %s71
      %s74 = sphi 0, %s73
      %s88 = sphi 0, %s74
      %s92 = sphi 0, %s92
      %s94 = sphi 0, %s92
      %s95 = sphi 0, %s94
      %s109 = sphi 0, %s95
      %s115 = sphi 0, %s117
      %s118 = sphi 0, %s115
      %s119 = sphi 0, %s118
      %s135 = sphi 0, %s119
    $region4: #{tpu_custom_call.1} parent=1 // loop_header_branch
      %19 = sbr.rel (%p17) target = $region8
    $region5: #{tpu_custom_call.1} parent=1 // loop_body
      %s21 = ssub.s32 %s16, 1
      %s22 = ssub.s32 %s16, 2
      %s23 = sadd.s32 %s16, 1
      %s24 = ssub.s32 %s16, %s23
      %p25 = scmp.eq.s32.totalorder %s24, 0
      %s27 = sadd.s32 %s26, 1
      %s28 = scalar_select %p25, %s26, %s27
      %p31 = pneg %p25
      %p32 = scmp.eq.s32.totalorder %s16, 1
      %p33 = por %p31, %p32
      %p34 = scmp.ne.s32.totalorder %s26, %s29
      %p35 = scmp.eq.s32.totalorder %s16, 0
      %p36 = por %p34, %p35
      %p37 = scmp.ne.s32.totalorder %s26, %s29
      %p38 = scmp.eq.s32.totalorder %s21, 1
      %p39 = por %p37, %p38
      %p40 = scmp.ne.s32.totalorder %s29, %s30
      %p41 = scmp.eq.s32.totalorder %s21, 0
      %p42 = por %p40, %p41
      %p43 = scmp.ne.s32.totalorder %s29, %s30
      %p44 = scmp.eq.s32.totalorder %s22, 1
      %p45 = por %p43, %p44
      %p47 = scmp.ne.s32.totalorder %s30, %s46
      %p48 = scmp.eq.s32.totalorder %s22, 0
      %p49 = por %p47, %p48
      %s51 = sadd.s32 %s50, 1
      %p54 = scmp.eq.s32.totalorder %s16, 1
      %p55 = scmp.ne.s32.totalorder %s50, %s52
      %p56 = scmp.eq.s32.totalorder %s16, 0
      %p57 = por %p55, %p56
      %p58 = scmp.ne.s32.totalorder %s50, %s52
      %p59 = scmp.eq.s32.totalorder %s21, 1
      %p60 = por %p58, %p59
      %p61 = scmp.ne.s32.totalorder %s52, %s53
      %p62 = scmp.eq.s32.totalorder %s21, 0
      %p63 = por %p61, %p62
      %p64 = scmp.ne.s32.totalorder %s52, %s53
      %p65 = scmp.eq.s32.totalorder %s22, 1
      %p66 = por %p64, %p65
      %p68 = scmp.ne.s32.totalorder %s53, %s67
      %p69 = scmp.eq.s32.totalorder %s22, 0
      %p70 = por %p68, %p69
      %s72 = sadd.s32 %s71, 1
      %p75 = scmp.eq.s32.totalorder %s16, 1
      %p76 = scmp.ne.s32.totalorder %s71, %s73
      %p77 = scmp.eq.s32.totalorder %s16, 0
      %p78 = por %p76, %p77
      %p79 = scmp.ne.s32.totalorder %s71, %s73
      %p80 = scmp.eq.s32.totalorder %s21, 1
      %p81 = por %p79, %p80
      %p82 = scmp.ne.s32.totalorder %s73, %s74
      %p83 = scmp.eq.s32.totalorder %s21, 0
      %p84 = por %p82, %p83
      %p85 = scmp.ne.s32.totalorder %s73, %s74
      %p86 = scmp.eq.s32.totalorder %s22, 1
      %p87 = por %p85, %p86
      %p89 = scmp.ne.s32.totalorder %s74, %s88
      %p90 = scmp.eq.s32.totalorder %s22, 0
      %p91 = por %p89, %p90
      %s93 = sadd.s32 %s92, 1
      %p96 = scmp.eq.s32.totalorder %s16, 1
      %p97 = scmp.ne.s32.totalorder %s92, %s94
      %p98 = scmp.eq.s32.totalorder %s16, 0
      %p99 = por %p97, %p98
      %p100 = scmp.ne.s32.totalorder %s92, %s94
      %p101 = scmp.eq.s32.totalorder %s21, 1
      %p102 = por %p100, %p101
      %p103 = scmp.ne.s32.totalorder %s94, %s95
      %p104 = scmp.eq.s32.totalorder %s21, 0
      %p105 = por %p103, %p104
      %p106 = scmp.ne.s32.totalorder %s94, %s95
      %p107 = scmp.eq.s32.totalorder %s22, 1
      %p108 = por %p106, %p107
      %p110 = scmp.ne.s32.totalorder %s95, %s109
      %p111 = scmp.eq.s32.totalorder %s22, 0
      %p112 = por %p110, %p111
      %s113 = ssub.s32 %s16, %s23
      %p114 = scmp.eq.s32.totalorder %s113, 0
      %s116 = sadd.s32 %s115, 1
      %s117 = scalar_select %p114, %s115, %s116
      %p120 = pneg %p114
      %p121 = scmp.eq.s32.totalorder %s16, 1
      %p122 = por %p120, %p121
      %p123 = scmp.ne.s32.totalorder %s115, %s118
      %p124 = scmp.eq.s32.totalorder %s16, 0
      %p125 = por %p123, %p124
      %p126 = scmp.ne.s32.totalorder %s115, %s118
      %p127 = scmp.eq.s32.totalorder %s21, 1
      %p128 = por %p126, %p127
      %p129 = scmp.ne.s32.totalorder %s118, %s119
      %p130 = scmp.eq.s32.totalorder %s21, 0
      %p131 = por %p129, %p130
      %p132 = scmp.ne.s32.totalorder %s118, %s119
      %p133 = scmp.eq.s32.totalorder %s22, 1
      %p134 = por %p132, %p133
      %p136 = scmp.ne.s32.totalorder %s119, %s135
      %p137 = scmp.eq.s32.totalorder %s22, 0
      %p138 = por %p136, %p137
      %p139 = scmp.le.s32.totalorder 1, %s16
      %p140 = scmp.lt.s32.totalorder %s16, 3
      %p141 = pnand %p139, %p140
      %p142 = pneg %p141
      // Predicated region
      $region9: #{tpu_custom_call.1} parent=5 // pred_check
        _
      $region10: #{tpu_custom_call.1} parent=5 // pred_check_branch
        %144 = sbr.rel (%p141) target = $region12
      $region11: #{tpu_custom_call.1} parent=5 // pred_region
        %s145 = ssub.s32 %s16, 1
        // Predicated region
        $region13: #{tpu_custom_call.1} parent=11 // pred_check
          %p146 = pneg %p63
        $region14: #{tpu_custom_call.1} parent=11 // pred_check_branch
          %148 = sbr.rel (%p146) target = $region16
        $region15: #{tpu_custom_call.1} parent=11 // pred_region
          _
        $region16: #{tpu_custom_call.1} parent=11 // pred_fallthru
          _
        // Predicated region
        $region17: #{tpu_custom_call.1} parent=11 // pred_check
          %p149 = pneg %p84
        $region18: #{tpu_custom_call.1} parent=11 // pred_check_branch
          %151 = sbr.rel (%p149) target = $region20
        $region19: #{tpu_custom_call.1} parent=11 // pred_region
          _
        $region20: #{tpu_custom_call.1} parent=11 // pred_fallthru
          _
        // Predicated region
        $region21: #{tpu_custom_call.1} parent=11 // pred_check
          %p152 = pneg %p105
        $region22: #{tpu_custom_call.1} parent=11 // pred_check_branch
          %154 = sbr.rel (%p152) target = $region24
        $region23: #{tpu_custom_call.1} parent=11 // pred_region
          _
        $region24: #{tpu_custom_call.1} parent=11 // pred_fallthru
          _
      $region12: #{tpu_custom_call.1} parent=5 // pred_fallthru
        _
      %p155 = scmp.lt.s32.totalorder %s16, 2
      // Predicated region
      $region25: #{tpu_custom_call.1} parent=5 // pred_check
        %p156 = pneg %p155
      $region26: #{tpu_custom_call.1} parent=5 // pred_check_branch
        %158 = sbr.rel (%p156) target = $region28
      $region27: #{tpu_custom_call.1} parent=5 // pred_region
        // Predicated region
        $region29: #{tpu_custom_call.1} parent=27 // pred_check
          %p159 = pneg %p36
        $region30: #{tpu_custom_call.1} parent=27 // pred_check_branch
          %161 = sbr.rel (%p159) target = $region32
        $region31: #{tpu_custom_call.1} parent=27 // pred_region
          %s162 = sand.u32 %s26, 1
          %s163 = scalar_lea.sflag [#allocation3], %s162
          %s164 = sand.u32 %s26, 1
          %s165 = smul.addr %s164, 64
          %s166 = scalar_lea.vmem [#allocation2], %s165
          %s167 = smul.u32 2, %s16
          %s169 = ssub.s32 1024, 1024
          %170 = vsyncadd %s163, %s169
          %s171 = smul.addr %s167, 128
          %s172 = scalar_lea.hbm %s0, %s171
          %s173 = sshll.u32 %s166, 4
          %s174 = int_to_ptr.vmem [resolvable:$true] %s173
          %179 = dma.hbm_to_vmem [thread:$0]  %s172, 1024, %s174, %s163, 512, 256, 16
        $region32: #{tpu_custom_call.1} parent=27 // pred_fallthru
          _
      $region28: #{tpu_custom_call.1} parent=5 // pred_fallthru
        _
      %p180 = scmp.le.s32.totalorder 1, %s16
      %p181 = scmp.lt.s32.totalorder %s16, 3
      %p182 = pnand %p180, %p181
      %p183 = pneg %p182
      // Predicated region
      $region33: #{tpu_custom_call.1} parent=5 // pred_check
        _
      $region34: #{tpu_custom_call.1} parent=5 // pred_check_branch
        %185 = sbr.rel (%p182) target = $region36
      $region35: #{tpu_custom_call.1} parent=5 // pred_region
        %s186 = ssub.s32 %s16, 1
        %s187 = sand.u32 %s29, 1
        %s188 = scalar_lea.sflag [#allocation3], %s187
        %s189 = sand.u32 %s29, 1
        %s190 = smul.addr %s189, 64
        %s191 = scalar_lea.vmem [#allocation2], %s190
        // Predicated region
        $region37: #{tpu_custom_call.1} parent=35 // pred_check
          %p192 = pneg %p42
        $region38: #{tpu_custom_call.1} parent=35 // pred_check_branch
          %194 = sbr.rel (%p192) target = $region40
        $region39: #{tpu_custom_call.1} parent=35 // pred_region
          %195 = dma.done %s188, 1024
        $region40: #{tpu_custom_call.1} parent=35 // pred_fallthru
          _
        %s196 = sand.u32 %s29, 1
        %s197 = scalar_lea.sflag [#allocation3], %s196
        %s198 = sand.u32 %s29, 1
        %s199 = smul.addr %s198, 64
        %s200 = scalar_lea.vmem [#allocation2], %s199
        %p201 = pneg %p42
        %p202 = pneg %p39
        %p203 = pneg %p63
        %p204 = pneg %p60
        %p205 = pneg %p84
        %p206 = pneg %p81
        %p207 = pneg %p105
        %p208 = pneg %p102
        %p209 = pneg %p131
        %p210 = pneg %p128
        %s211 = sand.u32 %s118, 1
        %s212 = scalar_lea.sflag [#allocation4], %s211
        %s213 = sand.u32 %s118, 1
        %s214 = smul.addr %s213, 64
        %s215 = scalar_lea.vmem [#allocation5], %s214
        %s216 = smul.u32 2, %s21
        %s217 = smul.u32 2, %s21
        %v218 = vld [vmem:[%s191] sm:$0xff]
        %v219 = vld [vmem:[%s191 + $0x8] sm:$0xff]
        %v220 = vld [vmem:[%s191 + $0x10] sm:$0xff]
        %v221 = vld [vmem:[%s191 + $0x18] sm:$0xff]
        %v222 = vld [vmem:[%s191 + $0x20] sm:$0xff]
        %v223 = vld [vmem:[%s191 + $0x28] sm:$0xff]
        %v224 = vld [vmem:[%s191 + $0x30] sm:$0xff]
        %v225 = vld [vmem:[%s191 + $0x38] sm:$0xff]
        %v226 = vld [vmem:[%s1] sm:$0xf]
        %vm227 = vcmask 261120
        %v229 = vsel %vm227, %v226, 0
        %231 = vmatprep.subr.mxu0 %v219
        %232 = vmatpush1.msra.mxu0 %v218
        %233 = vmatprep.subr.mxu0 %v221
        %234 = vmatpush1.msra.mxu0 %v220
        %235 = vmatprep.subr.mxu0 %v223
        %236 = vmatpush1.msra.mxu0 %v222
        %237 = vmatprep.subr.mxu0 %v225
        %238 = vmatpush1.msra.mxu0 %v224
        %239 = vmatprep.subr.mxu0 0.0
        %240 = vmatpush1.msra.mxu0 0.0
        %241 = vmatprep.subr.mxu0 0.0
        %242 = vmatpush1.msra.mxu0 0.0
        %243 = vmatprep.subr.mxu0 0.0
        %244 = vmatpush1.msra.mxu0 0.0
        %245 = vmatprep.subr.mxu0 0.0
        %246 = vmatpush1.msra.mxu0 0.0
        %247 = vmatprep.subr.mxu0 0.0
        %248 = vmatpush1.msra.mxu0 0.0
        %249 = vmatprep.subr.mxu0 0.0
        %250 = vmatpush1.msra.mxu0 0.0
        %251 = vmatprep.subr.mxu0 0.0
        %252 = vmatpush1.msra.mxu0 0.0
        %253 = vmatprep.subr.mxu0 0.0
        %254 = vmatpush1.msra.mxu0 0.0
        %255 = vmatprep.subr.mxu0 0.0
        %256 = vmatpush1.msra.mxu0 0.0
        %257 = vmatprep.subr.mxu0 0.0
        %258 = vmatpush1.msra.mxu0 0.0
        %259 = vmatprep.subr.mxu0 0.0
        %260 = vmatpush1.msra.mxu0 0.0
        %261 = vmatprep.subr.mxu0 0.0
        %262 = vmatpush1.msra.mxu0 0.0
        %263 = vmatprep.subr.mxu0 0.0
        %264 = vmatpush1.msra.mxu0 0.0
        %265 = vmatprep.subr.mxu0 0.0
        %266 = vmatpush1.msra.mxu0 0.0
        %267 = vmatprep.subr.mxu0 0.0
        %268 = vmatpush1.msra.mxu0 0.0
        %269 = vmatprep.subr.mxu0 0.0
        %270 = vmatpush1.msra.mxu0 0.0
        %271 = vmatprep.subr.mxu0 0.0
        %272 = vmatpush1.msra.mxu0 0.0
        %273 = vmatprep.subr.mxu0 0.0
        %274 = vmatpush1.msra.mxu0 0.0
        %275 = vmatprep.subr.mxu0 0.0
        %276 = vmatpush1.msra.mxu0 0.0
        %277 = vmatprep.subr.mxu0 0.0
        %278 = vmatpush1.msra.mxu0 0.0
        %279 = vmatprep.subr.mxu0 0.0
        %280 = vmatpush1.msra.mxu0 0.0
        %281 = vmatprep.subr.mxu0 0.0
        %282 = vmatpush1.msra.mxu0 0.0
        %283 = vmatprep.subr.mxu0 0.0
        %284 = vmatpush1.msra.mxu0 0.0
        %285 = vmatprep.subr.mxu0 0.0
        %286 = vmatpush1.msra.mxu0 0.0
        %287 = vmatprep.subr.mxu0 0.0
        %288 = vmatpush1.msra.mxu0 0.0
        %289 = vmatprep.subr.mxu0 0.0
        %290 = vmatpush1.msra.mxu0 0.0
        %291 = vmatprep.subr.mxu0 0.0
        %292 = vmatpush1.msra.mxu0 0.0
        %293 = vmatprep.subr.mxu0 0.0
        %294 = vmatpush1.msra.mxu0 0.0
        %295 = vmatprep.mubr.f32.mxu0 0.0
        %296 = vmatmul.mubr.f32.gmra.mrb[0].mxu0 %v229
        %v297 = vpop.f32.mrb[0].mxu0
        %v298 = vadd.f32 0.0, %v297
        %v299 = vpop.f32.mrb[0].mxu0
        %v300 = vadd.f32 0.0, %v299
        %301 = vdwg.mxu0
        %vm302 = vcmask 1043456
        %v303 = vsel %vm302, %v298, -inf
        %v304 = vrot.slane %v303, 4
        %v305 = vmax.f32 %v303, %v304
        %v306 = vrot.slane %v305, 2
        %v307 = vmax.f32 %v305, %v306
        %v308 = vrot.slane %v307, 1
        %v309 = vmax.f32 %v307, %v308
        %v310 = vsel %vm302, %v300, -inf
        %v311 = vrot.slane %v310, 4
        %v312 = vmax.f32 %v310, %v311
        %v313 = vrot.slane %v312, 2
        %v314 = vmax.f32 %v312, %v313
        %v315 = vrot.slane %v314, 1
        %v316 = vmax.f32 %v314, %v315
        %v317 = vsub.f32 %v298, %v309
        %v318 = vsub.f32 %v300, %v316
        %v319 = vmul.f32 %v317, 1.442695
        %v320 = vpow.pop %v319
        %v321 = vmul.f32 %v318, 1.442695
        %v322 = vpow.pop %v321
        %v323 = vsel %vm302, %v320, 0.0
        %v324 = vrot.slane %v323, 4
        %v325 = vadd.f32 %v323, %v324
        %v326 = vrot.slane %v325, 2
        %v327 = vadd.f32 %v325, %v326
        %v328 = vrot.slane %v327, 1
        %v329 = vadd.f32 %v327, %v328
        %v330 = vsel %vm302, %v322, 0.0
        %v331 = vrot.slane %v330, 4
        %v332 = vadd.f32 %v330, %v331
        %v333 = vrot.slane %v332, 2
        %v334 = vadd.f32 %v332, %v333
        %v335 = vrot.slane %v334, 1
        %v336 = vadd.f32 %v334, %v335
        %v337 = vrcp.pop %v329
        %v338 = vmul.f32 %v320, %v337
        %v339 = vrcp.pop %v336
        %v340 = vmul.f32 %v322, %v339
        %v341 = vld [vmem:[%s2] sm:$0xff]
        %v342 = vld [vmem:[%s2 + $0x8] sm:$0xff]
        %v343 = vld [vmem:[%s2 + $0x10] sm:$0xff]
        %v344 = vld [vmem:[%s2 + $0x18] sm:$0xff]
        %v345 = vld [vmem:[%s3] sm:$0xff]
        %v346 = vld [vmem:[%s3 + $0x8] sm:$0xff]
        %v347 = vld [vmem:[%s3 + $0x10] sm:$0xff]
        %v348 = vld [vmem:[%s3 + $0x18] sm:$0xff]
        %350 = vset.pattern.permute.xlu0 0
        %351 = vperm.xlu0 %350, %v345
        %v352 = vpop.permute.xlu0 %351
        %355 = vset.pattern.permute.xlu0 0
        %356 = vperm.xlu0 %355, %v346
        %v357 = vpop.permute.xlu0 %356
        %360 = vset.pattern.permute.xlu0 0
        %361 = vperm.xlu0 %360, %v347
        %v362 = vpop.permute.xlu0 %361
        %365 = vset.pattern.permute.xlu0 0
        %366 = vperm.xlu0 %365, %v348
        %v367 = vpop.permute.xlu0 %366
        %vm369 = vcmask 31744
        %v371 = vsel %vm369, %v341, 0
        %v374 = vsel %vm369, %v342, 0
        %v377 = vsel %vm369, %v343, 0
        %v380 = vsel %vm369, %v344, 0
        %v383 = vsel %vm302, %v338, 0
        %v386 = vsel %vm302, %v340, 0
        %388 = vmatprep.subr.mxu0 %v386
        %389 = vmatpush1.msra.mxu0 %v383
        %390 = vmatprep.subr.mxu0 0.0
        %391 = vmatpush1.msra.mxu0 0.0
        %392 = vmatprep.subr.mxu0 0.0
        %393 = vmatpush1.msra.mxu0 0.0
        %394 = vmatprep.subr.mxu0 0.0
        %395 = vmatpush1.msra.mxu0 0.0
        %396 = vmatprep.subr.mxu0 0.0
        %397 = vmatpush1.msra.mxu0 0.0
        %398 = vmatprep.subr.mxu0 0.0
        %399 = vmatpush1.msra.mxu0 0.0
        %400 = vmatprep.subr.mxu0 0.0
        %401 = vmatpush1.msra.mxu0 0.0
        %402 = vmatprep.subr.mxu0 0.0
        %403 = vmatpush1.msra.mxu0 0.0
        %404 = vmatprep.subr.mxu0 0.0
        %405 = vmatpush1.msra.mxu0 0.0
        %406 = vmatprep.subr.mxu0 0.0
        %407 = vmatpush1.msra.mxu0 0.0
        %408 = vmatprep.subr.mxu0 0.0
        %409 = vmatpush1.msra.mxu0 0.0
        %410 = vmatprep.subr.mxu0 0.0
        %411 = vmatpush1.msra.mxu0 0.0
        %412 = vmatprep.subr.mxu0 0.0
        %413 = vmatpush1.msra.mxu0 0.0
        %414 = vmatprep.subr.mxu0 0.0
        %415 = vmatpush1.msra.mxu0 0.0
        %416 = vmatprep.subr.mxu0 0.0
        %417 = vmatpush1.msra.mxu0 0.0
        %418 = vmatprep.subr.mxu0 0.0
        %419 = vmatpush1.msra.mxu0 0.0
        %420 = vmatprep.subr.mxu0 0.0
        %421 = vmatpush1.msra.mxu0 0.0
        %422 = vmatprep.subr.mxu0 0.0
        %423 = vmatpush1.msra.mxu0 0.0
        %424 = vmatprep.subr.mxu0 0.0
        %425 = vmatpush1.msra.mxu0 0.0
        %426 = vmatprep.subr.mxu0 0.0
        %427 = vmatpush1.msra.mxu0 0.0
        %428 = vmatprep.subr.mxu0 0.0
        %429 = vmatpush1.msra.mxu0 0.0
        %430 = vmatprep.subr.mxu0 0.0
        %431 = vmatpush1.msra.mxu0 0.0
        %432 = vmatprep.subr.mxu0 0.0
        %433 = vmatpush1.msra.mxu0 0.0
        %434 = vmatprep.subr.mxu0 0.0
        %435 = vmatpush1.msra.mxu0 0.0
        %436 = vmatprep.subr.mxu0 0.0
        %437 = vmatpush1.msra.mxu0 0.0
        %438 = vmatprep.subr.mxu0 0.0
        %439 = vmatpush1.msra.mxu0 0.0
        %440 = vmatprep.subr.mxu0 0.0
        %441 = vmatpush1.msra.mxu0 0.0
        %442 = vmatprep.subr.mxu0 0.0
        %443 = vmatpush1.msra.mxu0 0.0
        %444 = vmatprep.subr.mxu0 0.0
        %445 = vmatpush1.msra.mxu0 0.0
        %446 = vmatprep.subr.mxu0 0.0
        %447 = vmatpush1.msra.mxu0 0.0
        %448 = vmatprep.subr.mxu0 0.0
        %449 = vmatpush1.msra.mxu0 0.0
        %450 = vmatprep.subr.mxu0 0.0
        %451 = vmatpush1.msra.mxu0 0.0
        %452 = vmatprep.mubr.f32.mxu0 0.0
        %453 = vmatmul.mubr.f32.gmra.mrb[0].mxu0 %v371
        %v454 = vpop.f32.mrb[0].mxu0
        %v455 = vadd.f32 %v352, %v454
        %v456 = vpop.f32.mrb[0].mxu0
        %v457 = vadd.f32 %v352, %v456
        %458 = vmatprep.mubr.f32.mxu0 0.0
        %459 = vmatmul.mubr.f32.gmra.mrb[0].mxu0 %v374
        %v460 = vpop.f32.mrb[0].mxu0
        %v461 = vadd.f32 %v357, %v460
        %v462 = vpop.f32.mrb[0].mxu0
        %v463 = vadd.f32 %v357, %v462
        %464 = vmatprep.mubr.f32.mxu0 0.0
        %465 = vmatmul.mubr.f32.gmra.mrb[0].mxu0 %v377
        %v466 = vpop.f32.mrb[0].mxu0
        %v467 = vadd.f32 %v362, %v466
        %v468 = vpop.f32.mrb[0].mxu0
        %v469 = vadd.f32 %v362, %v468
        %470 = vmatprep.mubr.f32.mxu0 0.0
        %471 = vmatmul.mubr.f32.gmra.mrb[0].mxu0 %v380
        %v472 = vpop.f32.mrb[0].mxu0
        %v473 = vadd.f32 %v367, %v472
        %v474 = vpop.f32.mrb[0].mxu0
        %v475 = vadd.f32 %v367, %v474
        %476 = vdwg.mxu0
        %v477 = vadd.f32 %v218, %v455
        %v478 = vadd.f32 %v219, %v457
        %v479 = vadd.f32 %v220, %v461
        %v480 = vadd.f32 %v221, %v463
        %v481 = vadd.f32 %v222, %v467
        %v482 = vadd.f32 %v223, %v469
        %v483 = vadd.f32 %v224, %v473
        %v484 = vadd.f32 %v225, %v475
        %485 = vst [vmem:[%s215] sm:$0xff] %v477
        %486 = vst [vmem:[%s215 + $0x8] sm:$0xff] %v478
        %487 = vst [vmem:[%s215 + $0x10] sm:$0xff] %v479
        %488 = vst [vmem:[%s215 + $0x18] sm:$0xff] %v480
        %489 = vst [vmem:[%s215 + $0x20] sm:$0xff] %v481
        %490 = vst [vmem:[%s215 + $0x28] sm:$0xff] %v482
        %491 = vst [vmem:[%s215 + $0x30] sm:$0xff] %v483
        %492 = vst [vmem:[%s215 + $0x38] sm:$0xff] %v484
        %s493 = sand.u32 %s118, 1
        %s494 = scalar_lea.sflag [#allocation4], %s493
        %s495 = sand.u32 %s118, 1
        %s496 = smul.addr %s495, 64
        %s497 = scalar_lea.vmem [#allocation5], %s496
        // Predicated region
        $region41: #{tpu_custom_call.1} parent=35 // pred_check
          %p498 = pneg %p128
        $region42: #{tpu_custom_call.1} parent=35 // pred_check_branch
          %500 = sbr.rel (%p498) target = $region44
        $region43: #{tpu_custom_call.1} parent=35 // pred_region
          %s501 = smul.u32 2, %s21
          %s503 = ssub.s32 1024, 1024
          %504 = vsyncadd %s494, %s503
          %s505 = smul.addr %s501, 128
          %s506 = scalar_lea.hbm %s4, %s505
          %s507 = sshll.u32 %s497, 4
          %s508 = int_to_ptr.vmem [resolvable:$true] %s507
          %513 = dma.vmem_to_hbm [thread:$0]  %s508, 1024, %s506, %s494, 256, 512, 16
        $region44: #{tpu_custom_call.1} parent=35 // pred_fallthru
          _
      $region36: #{tpu_custom_call.1} parent=5 // pred_fallthru
        _
      %p514 = scmp.le.s32.totalorder 2, %s16
      // Predicated region
      $region45: #{tpu_custom_call.1} parent=5 // pred_check
        %p515 = pneg %p514
      $region46: #{tpu_custom_call.1} parent=5 // pred_check_branch
        %517 = sbr.rel (%p515) target = $region48
      $region47: #{tpu_custom_call.1} parent=5 // pred_region
        %s518 = ssub.s32 %s16, 2
        // Predicated region
        $region49: #{tpu_custom_call.1} parent=47 // pred_check
          %p519 = pneg %p134
        $region50: #{tpu_custom_call.1} parent=47 // pred_check_branch
          %521 = sbr.rel (%p519) target = $region52
        $region51: #{tpu_custom_call.1} parent=47 // pred_region
          %s522 = sand.u32 %s119, 1
          %s523 = scalar_lea.sflag [#allocation4], %s522
          %s524 = sand.u32 %s119, 1
          %s525 = smul.addr %s524, 64
          %s526 = scalar_lea.vmem [#allocation5], %s525
          %527 = dma.done %s523, 1024
        $region52: #{tpu_custom_call.1} parent=47 // pred_fallthru
          _
      $region48: #{tpu_custom_call.1} parent=5 // pred_fallthru
        _
    $region6: #{tpu_custom_call.1} parent=1 // loop_footer
      %s20 = sadd.s32 1, %s16
    $region7: #{tpu_custom_call.1} parent=1 // loop_footer_branch
      %15 = sbr.rel target = $region3
    $region8: #{tpu_custom_call.1} parent=1 // loop_exit
      _
    %528 = vsyncpa [#allocation3], 1
    %s529 = scalar_lea.sflag [#allocation3], 1
    %530 = vsyncpa %s529, 1
    %531 = vsyncpa [#allocation4], 1
    %s532 = scalar_lea.sflag [#allocation4], 1
    %533 = vsyncpa %s532, 1

</llo_original>
